<compile_context>
chip_gen: v7x
topology: tpu7x:2x2x1
jax: 0.10.0
libtpu: 0.0.40
codegen_flags: <defaults>
</compile_context>

<pallas_src>
import functools

import jax
import jax.numpy as jnp
from jax import lax
from jax.experimental import pallas as pl
from jax.experimental.pallas import tpu as pltpu

LANE = 128


def _round_up(x, m):
    return (x + m - 1) // m * m


def _vmem_limit_bytes():
    """~85% of this generation's physical VMEM, with a conservative fallback."""
    try:
        cap = getattr(pltpu.get_tpu_info(), "vmem_capacity_bytes", None)
    except Exception:
        cap = None
    if not cap:
        cap = 64 * 1024 * 1024            # safe on every generation (v7x physical)
    return int(cap * 0.85)


def _row_tiles(n_pad, tm):
    """Static (start, rows) row tiles covering [0, n_pad)."""
    tiles, start = [], 0
    while start < n_pad:
        rows = min(tm, n_pad - start)
        tiles.append((start, rows))
        start += rows
    return tuple(tiles)


# ----------------------------- Pallas kernel -------------------------------

def _fused_ppr_kernel(x_ref, w1t_ref, w2t_ref, a_hbm, out_ref, a_vmem, sem,
                      *, alpha, niter, tiles):
    def a_copy(idx, slot):
        start, rows = tiles[idx]
        return pltpu.make_async_copy(
            a_hbm.at[pl.ds(start, rows)],      # HBM row tile of A_hat
            a_vmem.at[pl.ds(start, rows)],     # its slot in the resident copy
            sem.at[slot])

    if niter > 0:
        a_copy(0, 0).start()   # overlap the first A row-tile DMA with the MLP

    # MLP: h = tanh(x @ W1^T); local = h @ W2^T  (bf16 operands, f32 accumulation)
    h = jnp.tanh(jnp.dot(x_ref[...], w1t_ref[...],
                         preferred_element_type=jnp.float32))
    local = jnp.dot(h.astype(w2t_ref.dtype), w2t_ref[...],
                    preferred_element_type=jnp.float32)

    if niter == 0:                                      # trace-time branch
        out_ref[...] = local.astype(out_ref.dtype)
        return

    alpha_local = alpha * local                         # hoisted: reused every iter
    local_bf16 = local.astype(a_vmem.dtype)

    # First power iteration, computed per row tile as A tiles land in VMEM.
    # Double-buffered DMAs hide the HBM->VMEM load of A behind this compute.
    for idx, (start, rows) in enumerate(tiles):
        slot = idx & 1
        a_copy(idx, slot).wait()
        if idx + 1 < len(tiles):
            a_copy(idx + 1, 1 - slot).start()
        out_ref[pl.ds(start, rows), :] = (
            jnp.dot(a_vmem[pl.ds(start, rows), :], local_bf16,
                    preferred_element_type=jnp.float32)
            + alpha_local[start:start + rows, :])

    # Remaining niter-1 iterations on the now fully resident VMEM copy of A.
    # fori_loop keeps the number of live (N, C) temporaries bounded for large
    # niter; small trip counts are unrolled for LLO scheduling visibility.
    def body(_, preds):
        return (jnp.dot(a_vmem[...], preds.astype(a_vmem.dtype),
                        preferred_element_type=jnp.float32) + alpha_local)

    preds = lax.fori_loop(0, niter - 1, body, out_ref[...], unroll=(niter <= 5))
    out_ref[...] = preds.astype(out_ref.dtype)


# --------------------------- one-time model prep -----------------------------

def prepare_ppr_state(w1, w2, a_hat, alpha, niter):
    """One-time, per-model prep — keep the result as model state and reuse it
    across forwards (the bf16 cast / padding of A_hat is NOT in the per-forward
    path).  w1: (n_hidden, in_feats); w2: (n_classes, n_hidden); a_hat: (N, N)
    dense (1-alpha) * D^-1/2 (A+I) D^-1/2."""
    n = a_hat.shape[0]
    n_hidden, in_feats = w1.shape
    n_classes = w2.shape[0]

    # Pad the node dim to a lane multiple so every DMA / matmul is lane-aligned.
    n_pad = _round_up(n, LANE)
    tm = min(256, n_pad)                     # row tile for the streamed A load
    f_pad = _round_up(in_feats, LANE)
    h_pad = _round_up(n_hidden, LANE)
    c_pad = _round_up(max(n_classes, LANE), LANE)

    w1t = jnp.zeros((f_pad, h_pad), jnp.float32).at[:in_feats, :n_hidden].set(
        jnp.asarray(w1, jnp.float32).T).astype(jnp.bfloat16)
    w2t = jnp.zeros((h_pad, c_pad), jnp.float32).at[:n_hidden, :n_classes].set(
        jnp.asarray(w2, jnp.float32).T).astype(jnp.bfloat16)
    a_p = jnp.zeros((n_pad, n_pad), jnp.float32).at[:n, :n].set(
        jnp.asarray(a_hat, jnp.float32)).astype(jnp.bfloat16)

    return dict(w1t=w1t, w2t=w2t, a_hat=a_p,
                n=n, n_pad=n_pad, tm=tm,
                in_feats=in_feats, f_pad=f_pad,
                n_classes=n_classes, c_pad=c_pad,
                alpha=float(alpha), niter=int(niter))


# ------------------------------- forward ------------------------------------

def ppr_model_forward(x, state):
    """x: (N, in_feats) node features (the module's `local_preds` input)."""
    n, f = state["n"], state["in_feats"]
    n_pad, f_pad, c_pad = state["n_pad"], state["f_pad"], state["c_pad"]
    tiles = _row_tiles(n_pad, state["tm"])

    # Per-forward prep: only the (cheap) bf16 cast + zero-pad of x.
    x_p = jnp.zeros((n_pad, f_pad), jnp.bfloat16).at[:n, :f].set(
        jnp.asarray(x, jnp.bfloat16))

    kernel = functools.partial(_fused_ppr_kernel, alpha=state["alpha"],
                               niter=state["niter"], tiles=tiles)

    out_padded = pl.pallas_call(
        kernel,
        out_shape=jax.ShapeDtypeStruct((n_pad, c_pad), jnp.float32),
        in_specs=[
            pl.BlockSpec(x_p.shape, lambda: (0, 0)),
            pl.BlockSpec(state["w1t"].shape, lambda: (0, 0)),
            pl.BlockSpec(state["w2t"].shape, lambda: (0, 0)),
            pl.BlockSpec(memory_space=pl.ANY),           # A_hat stays in HBM
        ],
        out_specs=pl.BlockSpec((n_pad, c_pad), lambda: (0, 0)),
        scratch_shapes=[
            pltpu.VMEM((n_pad, n_pad), jnp.bfloat16),    # resident copy of A_hat
            pltpu.SemaphoreType.DMA((2,)),               # double-buffered row DMAs
        ],
        compiler_params=pltpu.CompilerParams(
            vmem_limit_bytes=_vmem_limit_bytes(),
        ),
    )(x_p, state["w1t"], state["w2t"], state["a_hat"])

    # NOTE: this slice re-reads the (N_pad, 128) f32 result once; emit bf16 from
    # the kernel instead if the consumer tolerates low precision.
    return out_padded[:n, :state["n_classes"]]


# --------------------------- deterministic setup -----------------------------

def build_a_hat(key, n, alpha):
    """Dense (1 - alpha) * D^{-1/2} (A + I) D^{-1/2} for a synthetic graph."""
    u = jax.random.uniform(key, (n, n))
    a = (u + u.T) * 0.5 > 0.85                                   # symmetric adjacency
    a = a.astype(jnp.float32) + jnp.eye(n, dtype=jnp.float32)    # self-loops
    deg = jnp.sum(a, axis=1)
    d_inv_sqrt = 1.0 / jnp.sqrt(deg)
    a_norm = a * d_inv_sqrt[:, None] * d_inv_sqrt[None, :]
    return (1.0 - alpha) * a_norm


if __name__ == "__main__":
    key = jax.random.PRNGKey(0)
    k_x, k_w1, k_w2, k_adj = jax.random.split(key, 4)

    # small shapes consistent with the module
    n_nodes, in_feats, n_hidden, n_classes = 64, 32, 32, 8
    alpha, niter = 0.1, 4

    x = jax.random.normal(k_x, (n_nodes, in_feats), dtype=jnp.float32)
    # nn.Linear(in, out, bias=False) weight has shape (out, in)
    w1 = jax.random.normal(k_w1, (n_hidden, in_feats), dtype=jnp.float32) * 0.1
    w2 = jax.random.normal(k_w2, (n_classes, n_hidden), dtype=jnp.float32) * 0.1
    a_hat = build_a_hat(k_adj, n_nodes, alpha)

    # One-time model prep (cached state) — not part of the per-forward path.
    state = prepare_ppr_state(w1, w2, a_hat, alpha, niter)

    out = ppr_model_forward(x, state)
    out = jax.block_until_ready(out)

    # pure-JAX f32 reference (module semantics with identity dropout, bns=False).
    # Tolerance loosened because A_hat / preds / MLP operands use bf16 on the
    # MXU (f32 accumulation); the (1-alpha) contraction keeps the drift bounded.
    local_ref = jnp.tanh(x @ w1.T) @ w2.T
    preds_ref = local_ref
    for _ in range(niter):
        preds_ref = a_hat @ preds_ref + alpha * local_ref

    assert out.shape == (n_nodes, n_classes)
    assert jnp.allclose(out, preds_ref, atol=3e-2, rtol=3e-2), float(
        jnp.max(jnp.abs(out - preds_ref)))

    print("KERNEL_OK")
</pallas_src>

<mosaic_0001>
module attributes {stable_mosaic.version = 11 : i64} {
  func.func @_fused_ppr_kernel(%arg0: memref<128x128xbf16, #tpu.memory_space<vmem>>, %arg1: memref<128x128xbf16, #tpu.memory_space<vmem>>, %arg2: memref<128x128xbf16, #tpu.memory_space<vmem>>, %arg3: memref<128x128xbf16, #tpu.memory_space<any>>, %arg4: memref<128x128xf32, #tpu.memory_space<vmem>>, %arg5: memref<128x128xbf16, #tpu.memory_space<vmem>>, %arg6: memref<2x!tpu.dma_semaphore, #tpu.memory_space<semaphore_mem>>) attributes {dimension_semantics = [], scalar_prefetch = 0 : i64, scratch_operands = 2 : i64, tpu.core_type = #tpu.core_type<tc>} {
    %c0_i32 = arith.constant 0 : i32
    %c0_i32_0 = arith.constant 0 : i32
    %c0_i32_1 = arith.constant 0 : i32
    %0 = tpu.memref_slice %arg3[%c0_i32_0, %c0_i32_1] : memref<128x128xbf16, #tpu.memory_space<any>> -> memref<128x128xbf16, #tpu.memory_space<any>>
    %c0_i32_2 = arith.constant 0 : i32
    %c0_i32_3 = arith.constant 0 : i32
    %1 = tpu.memref_slice %arg5[%c0_i32_2, %c0_i32_3] : memref<128x128xbf16, #tpu.memory_space<vmem>> -> memref<128x128xbf16, #tpu.memory_space<vmem>>
    %2 = tpu.memref_slice %arg6[%c0_i32] : memref<2x!tpu.dma_semaphore, #tpu.memory_space<semaphore_mem>> -> memref<1x!tpu.dma_semaphore, #tpu.memory_space<semaphore_mem>>
    %3 = tpu.memref_squeeze %2 : memref<1x!tpu.dma_semaphore, #tpu.memory_space<semaphore_mem>> -> memref<!tpu.dma_semaphore, #tpu.memory_space<semaphore_mem>>
    tpu.enqueue_dma source(%0 : memref<128x128xbf16, #tpu.memory_space<any>>) target(%1 : memref<128x128xbf16, #tpu.memory_space<vmem>>) target_semaphore(%3 : memref<!tpu.dma_semaphore, #tpu.memory_space<semaphore_mem>>)
    %c0 = arith.constant 0 : index
    %c0_4 = arith.constant 0 : index
    %4 = vector.load %arg0[%c0, %c0_4] : memref<128x128xbf16, #tpu.memory_space<vmem>>, vector<128x128xbf16>
    %c0_5 = arith.constant 0 : index
    %c0_6 = arith.constant 0 : index
    %5 = vector.load %arg1[%c0_5, %c0_6] : memref<128x128xbf16, #tpu.memory_space<vmem>>, vector<128x128xbf16>
    %cst = arith.constant dense<0.000000e+00> : vector<128x128xf32>
    %6 = tpu.matmul %4, %5, %cst {dimension_numbers = #tpu.dot_dimension_numbers<[1], [0], [0], [1], [0, 0, 1, 1], [], []>} : vector<128x128xbf16>, vector<128x128xbf16>, vector<128x128xf32> -> vector<128x128xf32>
    %7 = math.tanh %6 : vector<128x128xf32>
    %8 = arith.truncf %7 : vector<128x128xf32> to vector<128x128xbf16>
    %c0_7 = arith.constant 0 : index
    %c0_8 = arith.constant 0 : index
    %9 = vector.load %arg2[%c0_7, %c0_8] : memref<128x128xbf16, #tpu.memory_space<vmem>>, vector<128x128xbf16>
    %cst_9 = arith.constant dense<0.000000e+00> : vector<128x128xf32>
    %10 = tpu.matmul %8, %9, %cst_9 {dimension_numbers = #tpu.dot_dimension_numbers<[1], [0], [0], [1], [0, 0, 1, 1], [], []>} : vector<128x128xbf16>, vector<128x128xbf16>, vector<128x128xf32> -> vector<128x128xf32>
    %cst_10 = arith.constant 1.000000e-01 : f32
    %11 = vector.broadcast %cst_10 : f32 to vector<128x128xf32>
    %12 = arith.mulf %11, %10 : vector<128x128xf32>
    %13 = arith.truncf %10 : vector<128x128xf32> to vector<128x128xbf16>
    %c0_i32_11 = arith.constant 0 : i32
    %c0_i32_12 = arith.constant 0 : i32
    %c0_i32_13 = arith.constant 0 : i32
    %14 = tpu.memref_slice %arg3[%c0_i32_12, %c0_i32_13] : memref<128x128xbf16, #tpu.memory_space<any>> -> memref<128x128xbf16, #tpu.memory_space<any>>
    %c0_i32_14 = arith.constant 0 : i32
    %c0_i32_15 = arith.constant 0 : i32
    %15 = tpu.memref_slice %arg5[%c0_i32_14, %c0_i32_15] : memref<128x128xbf16, #tpu.memory_space<vmem>> -> memref<128x128xbf16, #tpu.memory_space<vmem>>
    %16 = tpu.memref_slice %arg6[%c0_i32_11] : memref<2x!tpu.dma_semaphore, #tpu.memory_space<semaphore_mem>> -> memref<1x!tpu.dma_semaphore, #tpu.memory_space<semaphore_mem>>
    %17 = tpu.memref_squeeze %16 : memref<1x!tpu.dma_semaphore, #tpu.memory_space<semaphore_mem>> -> memref<!tpu.dma_semaphore, #tpu.memory_space<semaphore_mem>>
    tpu.wait_dma2 semaphore(%17 : memref<!tpu.dma_semaphore, #tpu.memory_space<semaphore_mem>>) src(%14 : memref<128x128xbf16, #tpu.memory_space<any>>) dst(%15 : memref<128x128xbf16, #tpu.memory_space<vmem>>)
    %c0_16 = arith.constant 0 : index
    %c0_17 = arith.constant 0 : index
    %18 = vector.load %arg5[%c0_16, %c0_17] : memref<128x128xbf16, #tpu.memory_space<vmem>>, vector<128x128xbf16>
    %cst_18 = arith.constant dense<0.000000e+00> : vector<128x128xf32>
    %19 = tpu.matmul %18, %13, %cst_18 {dimension_numbers = #tpu.dot_dimension_numbers<[1], [0], [0], [1], [0, 0, 1, 1], [], []>} : vector<128x128xbf16>, vector<128x128xbf16>, vector<128x128xf32> -> vector<128x128xf32>
    %20 = arith.addf %19, %12 : vector<128x128xf32>
    %c0_19 = arith.constant 0 : index
    %c0_20 = arith.constant 0 : index
    %21 = vector.load %arg4[%c0_19, %c0_20] : memref<128x128xf32, #tpu.memory_space<vmem>>, vector<128x128xf32>
    tpu.vector_store %arg4[%c0_19, %c0_20], %20 {strides = array<i32>} : memref<128x128xf32, #tpu.memory_space<vmem>>, vector<128x128xf32>,
    %c0_21 = arith.constant 0 : index
    %c0_22 = arith.constant 0 : index
    %22 = vector.load %arg4[%c0_21, %c0_22] : memref<128x128xf32, #tpu.memory_space<vmem>>, vector<128x128xf32>
    %c0_i32_23 = arith.constant 0 : i32
    %c0_24 = arith.constant 0 : index
    %c0_25 = arith.constant 0 : index
    %23 = vector.load %arg5[%c0_24, %c0_25] : memref<128x128xbf16, #tpu.memory_space<vmem>>, vector<128x128xbf16>
    %24 = arith.truncf %22 : vector<128x128xf32> to vector<128x128xbf16>
    %cst_26 = arith.constant dense<0.000000e+00> : vector<128x128xf32>
    %25 = tpu.matmul %23, %24, %cst_26 {dimension_numbers = #tpu.dot_dimension_numbers<[1], [0], [0], [1], [0, 0, 1, 1], [], []>} : vector<128x128xbf16>, vector<128x128xbf16>, vector<128x128xf32> -> vector<128x128xf32>
    %26 = arith.addf %25, %12 : vector<128x128xf32>
    %c1_i32 = arith.constant 1 : i32
    %c0_27 = arith.constant 0 : index
    %c0_28 = arith.constant 0 : index
    %27 = vector.load %arg5[%c0_27, %c0_28] : memref<128x128xbf16, #tpu.memory_space<vmem>>, vector<128x128xbf16>
    %28 = arith.truncf %26 : vector<128x128xf32> to vector<128x128xbf16>
    %cst_29 = arith.constant dense<0.000000e+00> : vector<128x128xf32>
    %29 = tpu.matmul %27, %28, %cst_29 {dimension_numbers = #tpu.dot_dimension_numbers<[1], [0], [0], [1], [0, 0, 1, 1], [], []>} : vector<128x128xbf16>, vector<128x128xbf16>, vector<128x128xf32> -> vector<128x128xf32>
    %30 = arith.addf %29, %12 : vector<128x128xf32>
    %c2_i32 = arith.constant 2 : i32
    %c0_30 = arith.constant 0 : index
    %c0_31 = arith.constant 0 : index
    %31 = vector.load %arg5[%c0_30, %c0_31] : memref<128x128xbf16, #tpu.memory_space<vmem>>, vector<128x128xbf16>
    %32 = arith.truncf %30 : vector<128x128xf32> to vector<128x128xbf16>
    %cst_32 = arith.constant dense<0.000000e+00> : vector<128x128xf32>
    %33 = tpu.matmul %31, %32, %cst_32 {dimension_numbers = #tpu.dot_dimension_numbers<[1], [0], [0], [1], [0, 0, 1, 1], [], []>} : vector<128x128xbf16>, vector<128x128xbf16>, vector<128x128xf32> -> vector<128x128xf32>
    %34 = arith.addf %33, %12 : vector<128x128xf32>
    %c0_33 = arith.constant 0 : index
    %c0_34 = arith.constant 0 : index
    %35 = vector.load %arg4[%c0_33, %c0_34] : memref<128x128xf32, #tpu.memory_space<vmem>>, vector<128x128xf32>
    tpu.vector_store %arg4[%c0_33, %c0_34], %34 {strides = array<i32>} : memref<128x128xf32, #tpu.memory_space<vmem>>, vector<128x128xf32>,
    return
  }
}

</mosaic_0001>

<llo_original>
// kernel: tpu_custom_call.1
$region0: #{tpu_custom_call.1}
  #allocation0 [shape = 'u32[]', space=smem, size = 0x4, offset = 0x4, fixed_abs, tag = 'smem constant byte address 0x4 - core index']
  #allocation1 [shape = 'u32[144,128]{1,0:T(1,128)}', space=vmem, size = 0x12000, scoped, tag = 'internal scratch']
  #allocation2 [shape = 'bf16[128,128]{1,0:T(16,128)(2,1)}', space=vmem, size = 0x8000, scoped, tag = 'scratch operand']
  #allocation3 [shape = 's32[2]{0}', space=sflag, size = 0x8, scoped, tag = 'scratch operand']
  #allocation11 [shape = 's32[]', space=sflag, size = 0x4, offset = 0, fixed_abs, tag = 'sflag constant byte address 0x0 - dummy sync flag']
  #allocation12 [shape = 's32[]', space=sflag, size = 0x4, offset = 0, fixed_abs, tag = 'sflag constant byte address 0x0 - dummy sync flag']
  #allocation13 [shape = 'u32[]', space=smem, size = 0x4, offset = 0x44, fixed_abs, tag = 'smem constant byte address 0x44 - assertion arg 0']
  #allocation14 [shape = 'u32[]', space=smem, size = 0x4, offset = 0x48, fixed_abs, tag = 'smem constant byte address 0x48 - assertion arg 1']
  %s0 = inlined_call_operand.hbm [shape: bf16[128,128], index: 0, kind: input, shape index: {}]
  %s1 = inlined_call_operand.hbm [shape: bf16[128,128], index: 1, kind: input, shape index: {}]
  %s2 = inlined_call_operand.hbm [shape: bf16[128,128], index: 2, kind: input, shape index: {}]
  %s3 = inlined_call_operand.hbm [shape: bf16[128,128], index: 3, kind: input, shape index: {}]
  %s4 = inlined_call_operand.hbm [shape: f32[128,128], index: 4, kind: output, shape index: {}]
  %s5 = sld [smem:[#allocation0]]
  $region38: #{tpu_custom_call.1} parent=0
    _
  %s7 = ssub.s32 1, %s5
  %s8 = scalar_select 0, %s7, %s5
  $region1: #{tpu_custom_call.1} parent=0
    #allocation4 [shape = 'u8[32768]{0}', space=vmem, size = 0x8000, scoped, tag = 'input window, operand 0, single buffered']
    #allocation5 [shape = 's32[1]{0}', space=sflag, size = 0x4, scoped, tag = 'scoped memory for tpu_custom_call.1']
    #allocation6 [shape = 's32[1]{0}', space=sflag, size = 0x4, scoped, tag = 'scoped memory for tpu_custom_call.1']
    #allocation7 [shape = 'u8[32768]{0}', space=vmem, size = 0x8000, scoped, tag = 'input window, operand 1, single buffered']
    #allocation8 [shape = 's32[1]{0}', space=sflag, size = 0x4, scoped, tag = 'scoped memory for tpu_custom_call.1']
    #allocation9 [shape = 'u8[32768]{0}', space=vmem, size = 0x8000, scoped, tag = 'input window, operand 2, single buffered']
    #allocation10 [shape = 'u8[65536]{0}', space=vmem, size = 0x10000, scoped, tag = 'output window, operand 0, single buffered']
    %9 = vsyncpa [#allocation5], 0
    %10 = vsyncpa [#allocation8], 0
    %11 = vsyncpa [#allocation6], 0
    // Predicated region
    $region2: #{tpu_custom_call.1} parent=1 // pred_check
      _
    $region3: #{tpu_custom_call.1} parent=1 // pred_check_branch
      %13 = sbr.rel (0) target = $region5
    $region4: #{tpu_custom_call.1} parent=1 // pred_region
      %s15 = ssub.s32 1024, 1024
      %16 = vsyncadd [#allocation5], %s15
      %s17 = sshll.u32 [#allocation4], 4
      %s18 = int_to_ptr.vmem [resolvable:$true] %s17
      %23 = dma.hbm_to_vmem [thread:$0]  %s0, 1024, %s18, [#allocation5], 64, 64, 4
    $region5: #{tpu_custom_call.1} parent=1 // pred_fallthru
      _
    // Predicated region
    $region6: #{tpu_custom_call.1} parent=1 // pred_check
      _
    $region7: #{tpu_custom_call.1} parent=1 // pred_check_branch
      %25 = sbr.rel (0) target = $region9
    $region8: #{tpu_custom_call.1} parent=1 // pred_region
      %s27 = ssub.s32 1024, 1024
      %28 = vsyncadd [#allocation8], %s27
      %s29 = sshll.u32 [#allocation7], 4
      %s30 = int_to_ptr.vmem [resolvable:$true] %s29
      %35 = dma.hbm_to_vmem [thread:$0]  %s1, 1024, %s30, [#allocation8], 64, 64, 4
    $region9: #{tpu_custom_call.1} parent=1 // pred_fallthru
      _
    // Predicated region
    $region10: #{tpu_custom_call.1} parent=1 // pred_check
      _
    $region11: #{tpu_custom_call.1} parent=1 // pred_check_branch
      %37 = sbr.rel (0) target = $region13
    $region12: #{tpu_custom_call.1} parent=1 // pred_region
      %s39 = ssub.s32 1024, 1024
      %40 = vsyncadd [#allocation8], %s39
      %s41 = sshll.u32 [#allocation9], 4
      %s42 = int_to_ptr.vmem [resolvable:$true] %s41
      %47 = dma.hbm_to_vmem [thread:$0]  %s2, 1024, %s42, [#allocation8], 64, 64, 4
    $region13: #{tpu_custom_call.1} parent=1 // pred_fallthru
      _
    // Predicated region
    $region14: #{tpu_custom_call.1} parent=1 // pred_check
      _
    $region15: #{tpu_custom_call.1} parent=1 // pred_check_branch
      %49 = sbr.rel (0) target = $region17
    $region16: #{tpu_custom_call.1} parent=1 // pred_region
      %50 = dma.done [#allocation5], 1024
    $region17: #{tpu_custom_call.1} parent=1 // pred_fallthru
      _
    // Predicated region
    $region18: #{tpu_custom_call.1} parent=1 // pred_check
      _
    $region19: #{tpu_custom_call.1} parent=1 // pred_check_branch
      %52 = sbr.rel (0) target = $region21
    $region20: #{tpu_custom_call.1} parent=1 // pred_region
      %53 = dma.done [#allocation8], 1024
    $region21: #{tpu_custom_call.1} parent=1 // pred_fallthru
      _
    // Predicated region
    $region22: #{tpu_custom_call.1} parent=1 // pred_check
      _
    $region23: #{tpu_custom_call.1} parent=1 // pred_check_branch
      %55 = sbr.rel (0) target = $region25
    $region24: #{tpu_custom_call.1} parent=1 // pred_region
      %56 = dma.done [#allocation8], 1024
    $region25: #{tpu_custom_call.1} parent=1 // pred_fallthru
      _
    // Predicated region
    $region26: #{tpu_custom_call.1} parent=1 // pred_check
      _
    $region27: #{tpu_custom_call.1} parent=1 // pred_check_branch
      %59 = sbr.rel target = $region29
    $region28: #{tpu_custom_call.1} parent=1 // pred_region
      %60 = sst [smem:[#allocation13]] [#allocation12]
      %61 = sst [smem:[#allocation14]] [#allocation11]
    $region29: #{tpu_custom_call.1} parent=1 // pred_fallthru
      _
    %63 = shalt.err (0)
    %s65 = sshll.u32 [#allocation2], 4
    %s66 = int_to_ptr.vmem [resolvable:$true] %s65
    %68 = dma.hbm_to_vmem [thread:$0]  %s3, 1024, %s66, [#allocation3]
    %v69 = vld [vmem:[#allocation4] sm:$0xf]
    %v70 = vld [vmem:[#allocation4 + $0x4] sm:$0xf]
    %v71 = vld [vmem:[#allocation4 + $0x8] sm:$0xf]
    %v72 = vld [vmem:[#allocation4 + $0xc] sm:$0xf]
    %v73 = vld [vmem:[#allocation4 + $0x10] sm:$0xf]
    %v74 = vld [vmem:[#allocation4 + $0x14] sm:$0xf]
    %v75 = vld [vmem:[#allocation4 + $0x18] sm:$0xf]
    %v76 = vld [vmem:[#allocation4 + $0x1c] sm:$0xf]
    %v77 = vld [vmem:[#allocation4 + $0x20] sm:$0xf]
    %v78 = vld [vmem:[#allocation4 + $0x24] sm:$0xf]
    %v79 = vld [vmem:[#allocation4 + $0x28] sm:$0xf]
    %v80 = vld [vmem:[#allocation4 + $0x2c] sm:$0xf]
    %v81 = vld [vmem:[#allocation4 + $0x30] sm:$0xf]
    %v82 = vld [vmem:[#allocation4 + $0x34] sm:$0xf]
    %v83 = vld [vmem:[#allocation4 + $0x38] sm:$0xf]
    %v84 = vld [vmem:[#allocation4 + $0x3c] sm:$0xf]
    %v85 = vld [vmem:[#allocation7] sm:$0xf]
    %v86 = vld [vmem:[#allocation7 + $0x4] sm:$0xf]
    %v87 = vld [vmem:[#allocation7 + $0x8] sm:$0xf]
    %v88 = vld [vmem:[#allocation7 + $0xc] sm:$0xf]
    %v89 = vld [vmem:[#allocation7 + $0x10] sm:$0xf]
    %v90 = vld [vmem:[#allocation7 + $0x14] sm:$0xf]
    %v91 = vld [vmem:[#allocation7 + $0x18] sm:$0xf]
    %v92 = vld [vmem:[#allocation7 + $0x1c] sm:$0xf]
    %v93 = vld [vmem:[#allocation7 + $0x20] sm:$0xf]
    %v94 = vld [vmem:[#allocation7 + $0x24] sm:$0xf]
    %v95 = vld [vmem:[#allocation7 + $0x28] sm:$0xf]
    %v96 = vld [vmem:[#allocation7 + $0x2c] sm:$0xf]
    %v97 = vld [vmem:[#allocation7 + $0x30] sm:$0xf]
    %v98 = vld [vmem:[#allocation7 + $0x34] sm:$0xf]
    %v99 = vld [vmem:[#allocation7 + $0x38] sm:$0xf]
    %v100 = vld [vmem:[#allocation7 + $0x3c] sm:$0xf]
    %v117 = vunpack.c.l.b16 %v69
    %v118 = vunpack.c.l.b16 %v70
    %v119 = vunpack.c.l.b16 %v71
    %v120 = vunpack.c.l.b16 %v72
    %v121 = vunpack.c.l.b16 %v73
    %v122 = vunpack.c.l.b16 %v74
    %v123 = vunpack.c.l.b16 %v75
    %v124 = vunpack.c.l.b16 %v76
    %v125 = vunpack.c.l.b16 %v77
    %v126 = vunpack.c.l.b16 %v78
    %v127 = vunpack.c.l.b16 %v79
    %v128 = vunpack.c.l.b16 %v80
    %v129 = vunpack.c.l.b16 %v81
    %v130 = vunpack.c.l.b16 %v82
    %v131 = vunpack.c.l.b16 %v83
    %v132 = vunpack.c.l.b16 %v84
    %v133 = vpack.c.b16 %v118, %v117
    %v134 = vpack.c.b16 %v120, %v119
    %v135 = vpack.c.b16 %v122, %v121
    %v136 = vpack.c.b16 %v124, %v123
    %v137 = vpack.c.b16 %v126, %v125
    %v138 = vpack.c.b16 %v128, %v127
    %v139 = vpack.c.b16 %v130, %v129
    %v140 = vpack.c.b16 %v132, %v131
    %v165 = vunpack.c.l.b16 %v85
    %v166 = vunpack.c.l.b16 %v86
    %v167 = vunpack.c.l.b16 %v87
    %v168 = vunpack.c.l.b16 %v88
    %v169 = vunpack.c.l.b16 %v89
    %v170 = vunpack.c.l.b16 %v90
    %v171 = vunpack.c.l.b16 %v91
    %v172 = vunpack.c.l.b16 %v92
    %v173 = vunpack.c.l.b16 %v93
    %v174 = vunpack.c.l.b16 %v94
    %v175 = vunpack.c.l.b16 %v95
    %v176 = vunpack.c.l.b16 %v96
    %v177 = vunpack.c.l.b16 %v97
    %v178 = vunpack.c.l.b16 %v98
    %v179 = vunpack.c.l.b16 %v99
    %v180 = vunpack.c.l.b16 %v100
    %v181 = vpack.c.b16 %v166, %v165
    %v182 = vpack.c.b16 %v168, %v167
    %v183 = vpack.c.b16 %v170, %v169
    %v184 = vpack.c.b16 %v172, %v171
    %v185 = vpack.c.b16 %v174, %v173
    %v186 = vpack.c.b16 %v176, %v175
    %v187 = vpack.c.b16 %v178, %v177
    %v188 = vpack.c.b16 %v180, %v179
    %197 = vmatprep.subr.bf16.mxu0 0
    %198 = vmatpush1.bf16.msra.mxu0 %v181
    %199 = vmatprep.subr.bf16.mxu0 0
    %200 = vmatpush1.bf16.msra.mxu0 %v182
    %201 = vmatprep.subr.bf16.mxu0 0
    %202 = vmatpush1.bf16.msra.mxu0 %v183
    %203 = vmatprep.subr.bf16.mxu0 0
    %204 = vmatpush1.bf16.msra.mxu0 %v184
    %205 = vmatprep.subr.bf16.mxu0 0
    %206 = vmatpush1.bf16.msra.mxu0 %v185
    %207 = vmatprep.subr.bf16.mxu0 0
    %208 = vmatpush1.bf16.msra.mxu0 %v186
    %209 = vmatprep.subr.bf16.mxu0 0
    %210 = vmatpush1.bf16.msra.mxu0 %v187
    %211 = vmatprep.subr.bf16.mxu0 0
    %212 = vmatpush1.bf16.msra.mxu0 %v188
    %213 = vmatprep.subr.bf16.mxu0 0
    %214 = vmatpush1.bf16.msra.mxu0 0
    %215 = vmatprep.subr.bf16.mxu0 0
    %216 = vmatpush1.bf16.msra.mxu0 0
    %217 = vmatprep.subr.bf16.mxu0 0
    %218 = vmatpush1.bf16.msra.mxu0 0
    %219 = vmatprep.subr.bf16.mxu0 0
    %220 = vmatpush1.bf16.msra.mxu0 0
    %221 = vmatprep.subr.bf16.mxu0 0
    %222 = vmatpush1.bf16.msra.mxu0 0
    %223 = vmatprep.subr.bf16.mxu0 0
    %224 = vmatpush1.bf16.msra.mxu0 0
    %225 = vmatprep.subr.bf16.mxu0 0
    %226 = vmatpush1.bf16.msra.mxu0 0
    %227 = vmatprep.subr.bf16.mxu0 0
    %228 = vmatpush1.bf16.msra.mxu0 0
    %229 = vmatprep.mubr.bf16.mxu0 0
    %230 = vmatmul.mubr.bf16.gmra.mrb[0].mxu0 %v133
    %v231 = vpop.f32.mrb[0].mxu0
    %v232 = vadd.f32 0.0, %v231
    %v233 = vpop.f32.mrb[0].mxu0
    %v234 = vpop.f32.mrb[0].mxu0
    %v235 = vadd.f32 0.0, %v234
    %v236 = vpop.f32.mrb[0].mxu0
    %237 = vmatprep.mubr.bf16.mxu0 0
    %238 = vmatmul.mubr.bf16.gmra.mrb[0].mxu0 %v134
    %v239 = vpop.f32.mrb[0].mxu0
    %v240 = vadd.f32 0.0, %v239
    %v241 = vpop.f32.mrb[0].mxu0
    %v242 = vpop.f32.mrb[0].mxu0
    %v243 = vadd.f32 0.0, %v242
    %v244 = vpop.f32.mrb[0].mxu0
    %245 = vmatprep.mubr.bf16.mxu0 0
    %246 = vmatmul.mubr.bf16.gmra.mrb[0].mxu0 %v135
    %v247 = vpop.f32.mrb[0].mxu0
    %v248 = vadd.f32 0.0, %v247
    %v249 = vpop.f32.mrb[0].mxu0
    %v250 = vpop.f32.mrb[0].mxu0
    %v251 = vadd.f32 0.0, %v250
    %v252 = vpop.f32.mrb[0].mxu0
    %253 = vmatprep.mubr.bf16.mxu0 0
    %254 = vmatmul.mubr.bf16.gmra.mrb[0].mxu0 %v136
    %v255 = vpop.f32.mrb[0].mxu0
    %v256 = vadd.f32 0.0, %v255
    %v257 = vpop.f32.mrb[0].mxu0
    %v258 = vpop.f32.mrb[0].mxu0
    %v259 = vadd.f32 0.0, %v258
    %v260 = vpop.f32.mrb[0].mxu0
    %261 = vmatprep.mubr.bf16.mxu0 0
    %262 = vmatmul.mubr.bf16.gmra.mrb[0].mxu0 %v137
    %v263 = vpop.f32.mrb[0].mxu0
    %v264 = vadd.f32 0.0, %v263
    %v265 = vpop.f32.mrb[0].mxu0
    %v266 = vpop.f32.mrb[0].mxu0
    %v267 = vadd.f32 0.0, %v266
    %v268 = vpop.f32.mrb[0].mxu0
    %269 = vmatprep.mubr.bf16.mxu0 0
    %270 = vmatmul.mubr.bf16.gmra.mrb[0].mxu0 %v138
    %v271 = vpop.f32.mrb[0].mxu0
    %v272 = vadd.f32 0.0, %v271
    %v273 = vpop.f32.mrb[0].mxu0
    %v274 = vpop.f32.mrb[0].mxu0
    %v275 = vadd.f32 0.0, %v274
    %v276 = vpop.f32.mrb[0].mxu0
    %277 = vmatprep.mubr.bf16.mxu0 0
    %278 = vmatmul.mubr.bf16.gmra.mrb[0].mxu0 %v139
    %v279 = vpop.f32.mrb[0].mxu0
    %v280 = vadd.f32 0.0, %v279
    %v281 = vpop.f32.mrb[0].mxu0
    %v282 = vpop.f32.mrb[0].mxu0
    %v283 = vadd.f32 0.0, %v282
    %v284 = vpop.f32.mrb[0].mxu0
    %285 = vmatprep.mubr.bf16.mxu0 0
    %286 = vmatmul.mubr.bf16.gmra.mrb[0].mxu0 %v140
    %v287 = vpop.f32.mrb[0].mxu0
    %v288 = vadd.f32 0.0, %v287
    %v289 = vpop.f32.mrb[0].mxu0
    %v290 = vpop.f32.mrb[0].mxu0
    %v291 = vadd.f32 0.0, %v290
    %v292 = vpop.f32.mrb[0].mxu0
    %293 = vdwg.mxu0
    %v294 = vtanh.pop %v232
    %v295 = vtanh.pop %v235
    %v296 = vtanh.pop %v240
    %v297 = vtanh.pop %v243
    %v298 = vtanh.pop %v248
    %v299 = vtanh.pop %v251
    %v300 = vtanh.pop %v256
    %v301 = vtanh.pop %v259
    %v302 = vtanh.pop %v264
    %v303 = vtanh.pop %v267
    %v304 = vtanh.pop %v272
    %v305 = vtanh.pop %v275
    %v306 = vtanh.pop %v280
    %v307 = vtanh.pop %v283
    %v308 = vtanh.pop %v288
    %v309 = vtanh.pop %v291
    %v310 = vpack.c.bf16 %v295, %v294
    %v311 = vpack.c.bf16 %v297, %v296
    %v312 = vpack.c.bf16 %v299, %v298
    %v313 = vpack.c.bf16 %v301, %v300
    %v314 = vpack.c.bf16 %v303, %v302
    %v315 = vpack.c.bf16 %v305, %v304
    %v316 = vpack.c.bf16 %v307, %v306
    %v317 = vpack.c.bf16 %v309, %v308
    %v318 = vld [vmem:[#allocation9] sm:$0xf]
    %v319 = vld [vmem:[#allocation9 + $0x4] sm:$0xf]
    %v320 = vld [vmem:[#allocation9 + $0x8] sm:$0xf]
    %v321 = vld [vmem:[#allocation9 + $0xc] sm:$0xf]
    %v322 = vld [vmem:[#allocation9 + $0x10] sm:$0xf]
    %v323 = vld [vmem:[#allocation9 + $0x14] sm:$0xf]
    %v324 = vld [vmem:[#allocation9 + $0x18] sm:$0xf]
    %v325 = vld [vmem:[#allocation9 + $0x1c] sm:$0xf]
    %v326 = vld [vmem:[#allocation9 + $0x20] sm:$0xf]
    %v327 = vld [vmem:[#allocation9 + $0x24] sm:$0xf]
    %v328 = vld [vmem:[#allocation9 + $0x28] sm:$0xf]
    %v329 = vld [vmem:[#allocation9 + $0x2c] sm:$0xf]
    %v330 = vld [vmem:[#allocation9 + $0x30] sm:$0xf]
    %v331 = vld [vmem:[#allocation9 + $0x34] sm:$0xf]
    %v332 = vld [vmem:[#allocation9 + $0x38] sm:$0xf]
    %v333 = vld [vmem:[#allocation9 + $0x3c] sm:$0xf]
    %v350 = vunpack.c.l.b16 %v318
    %v351 = vunpack.c.l.b16 %v319
    %v352 = vunpack.c.l.b16 %v320
    %v353 = vunpack.c.l.b16 %v321
    %v354 = vunpack.c.l.b16 %v322
    %v355 = vunpack.c.l.b16 %v323
    %v356 = vunpack.c.l.b16 %v324
    %v357 = vunpack.c.l.b16 %v325
    %v358 = vunpack.c.l.b16 %v326
    %v359 = vunpack.c.l.b16 %v327
    %v360 = vunpack.c.l.b16 %v328
    %v361 = vunpack.c.l.b16 %v329
    %v362 = vunpack.c.l.b16 %v330
    %v363 = vunpack.c.l.b16 %v331
    %v364 = vunpack.c.l.b16 %v332
    %v365 = vunpack.c.l.b16 %v333
    %v366 = vpack.c.b16 %v351, %v350
    %v367 = vpack.c.b16 %v353, %v352
    %v368 = vpack.c.b16 %v355, %v354
    %v369 = vpack.c.b16 %v357, %v356
    %v370 = vpack.c.b16 %v359, %v358
    %v371 = vpack.c.b16 %v361, %v360
    %v372 = vpack.c.b16 %v363, %v362
    %v373 = vpack.c.b16 %v365, %v364
    %382 = vmatprep.subr.bf16.mxu0 0
    %383 = vmatpush1.bf16.msra.mxu0 %v366
    %384 = vmatprep.subr.bf16.mxu0 0
    %385 = vmatpush1.bf16.msra.mxu0 %v367
    %386 = vmatprep.subr.bf16.mxu0 0
    %387 = vmatpush1.bf16.msra.mxu0 %v368
    %388 = vmatprep.subr.bf16.mxu0 0
    %389 = vmatpush1.bf16.msra.mxu0 %v369
    %390 = vmatprep.subr.bf16.mxu0 0
    %391 = vmatpush1.bf16.msra.mxu0 %v370
    %392 = vmatprep.subr.bf16.mxu0 0
    %393 = vmatpush1.bf16.msra.mxu0 %v371
    %394 = vmatprep.subr.bf16.mxu0 0
    %395 = vmatpush1.bf16.msra.mxu0 %v372
    %396 = vmatprep.subr.bf16.mxu0 0
    %397 = vmatpush1.bf16.msra.mxu0 %v373
    %398 = vmatprep.subr.bf16.mxu0 0
    %399 = vmatpush1.bf16.msra.mxu0 0
    %400 = vmatprep.subr.bf16.mxu0 0
    %401 = vmatpush1.bf16.msra.mxu0 0
    %402 = vmatprep.subr.bf16.mxu0 0
    %403 = vmatpush1.bf16.msra.mxu0 0
    %404 = vmatprep.subr.bf16.mxu0 0
    %405 = vmatpush1.bf16.msra.mxu0 0
    %406 = vmatprep.subr.bf16.mxu0 0
    %407 = vmatpush1.bf16.msra.mxu0 0
    %408 = vmatprep.subr.bf16.mxu0 0
    %409 = vmatpush1.bf16.msra.mxu0 0
    %410 = vmatprep.subr.bf16.mxu0 0
    %411 = vmatpush1.bf16.msra.mxu0 0
    %412 = vmatprep.subr.bf16.mxu0 0
    %413 = vmatpush1.bf16.msra.mxu0 0
    %414 = vmatprep.mubr.bf16.mxu0 0
    %415 = vmatmul.mubr.bf16.gmra.mrb[0].mxu0 %v310
    %v416 = vpop.f32.mrb[0].mxu0
    %v417 = vadd.f32 0.0, %v416
    %v418 = vpop.f32.mrb[0].mxu0
    %v419 = vpop.f32.mrb[0].mxu0
    %v420 = vadd.f32 0.0, %v419
    %v421 = vpop.f32.mrb[0].mxu0
    %422 = vmatprep.mubr.bf16.mxu0 0
    %423 = vmatmul.mubr.bf16.gmra.mrb[0].mxu0 %v311
    %v424 = vpop.f32.mrb[0].mxu0
    %v425 = vadd.f32 0.0, %v424
    %v426 = vpop.f32.mrb[0].mxu0
    %v427 = vpop.f32.mrb[0].mxu0
    %v428 = vadd.f32 0.0, %v427
    %v429 = vpop.f32.mrb[0].mxu0
    %430 = vmatprep.mubr.bf16.mxu0 0
    %431 = vmatmul.mubr.bf16.gmra.mrb[0].mxu0 %v312
    %v432 = vpop.f32.mrb[0].mxu0
    %v433 = vadd.f32 0.0, %v432
    %v434 = vpop.f32.mrb[0].mxu0
    %v435 = vpop.f32.mrb[0].mxu0
    %v436 = vadd.f32 0.0, %v435
    %v437 = vpop.f32.mrb[0].mxu0
    %438 = vmatprep.mubr.bf16.mxu0 0
    %439 = vmatmul.mubr.bf16.gmra.mrb[0].mxu0 %v313
    %v440 = vpop.f32.mrb[0].mxu0
    %v441 = vadd.f32 0.0, %v440
    %v442 = vpop.f32.mrb[0].mxu0
    %v443 = vpop.f32.mrb[0].mxu0
    %v444 = vadd.f32 0.0, %v443
    %v445 = vpop.f32.mrb[0].mxu0
    %446 = vmatprep.mubr.bf16.mxu0 0
    %447 = vmatmul.mubr.bf16.gmra.mrb[0].mxu0 %v314
    %v448 = vpop.f32.mrb[0].mxu0
    %v449 = vadd.f32 0.0, %v448
    %v450 = vpop.f32.mrb[0].mxu0
    %v451 = vpop.f32.mrb[0].mxu0
    %v452 = vadd.f32 0.0, %v451
    %v453 = vpop.f32.mrb[0].mxu0
    %454 = vmatprep.mubr.bf16.mxu0 0
    %455 = vmatmul.mubr.bf16.gmra.mrb[0].mxu0 %v315
    %v456 = vpop.f32.mrb[0].mxu0
    %v457 = vadd.f32 0.0, %v456
    %v458 = vpop.f32.mrb[0].mxu0
    %v459 = vpop.f32.mrb[0].mxu0
    %v460 = vadd.f32 0.0, %v459
    %v461 = vpop.f32.mrb[0].mxu0
    %462 = vmatprep.mubr.bf16.mxu0 0
    %463 = vmatmul.mubr.bf16.gmra.mrb[0].mxu0 %v316
    %v464 = vpop.f32.mrb[0].mxu0
    %v465 = vadd.f32 0.0, %v464
    %v466 = vpop.f32.mrb[0].mxu0
    %v467 = vpop.f32.mrb[0].mxu0
    %v468 = vadd.f32 0.0, %v467
    %v469 = vpop.f32.mrb[0].mxu0
    %470 = vmatprep.mubr.bf16.mxu0 0
    %471 = vmatmul.mubr.bf16.gmra.mrb[0].mxu0 %v317
    %v472 = vpop.f32.mrb[0].mxu0
    %v473 = vadd.f32 0.0, %v472
    %v474 = vpop.f32.mrb[0].mxu0
    %v475 = vpop.f32.mrb[0].mxu0
    %v476 = vadd.f32 0.0, %v475
    %v477 = vpop.f32.mrb[0].mxu0
    %478 = vdwg.mxu0
    %v479 = vmul.f32 %v417, 0.1
    %v480 = vmul.f32 %v420, 0.1
    %v481 = vmul.f32 %v425, 0.1
    %v482 = vmul.f32 %v428, 0.1
    %v483 = vmul.f32 %v433, 0.1
    %v484 = vmul.f32 %v436, 0.1
    %v485 = vmul.f32 %v441, 0.1
    %v486 = vmul.f32 %v444, 0.1
    %v487 = vmul.f32 %v449, 0.1
    %v488 = vmul.f32 %v452, 0.1
    %v489 = vmul.f32 %v457, 0.1
    %v490 = vmul.f32 %v460, 0.1
    %v491 = vmul.f32 %v465, 0.1
    %v492 = vmul.f32 %v468, 0.1
    %v493 = vmul.f32 %v473, 0.1
    %v494 = vmul.f32 %v476, 0.1
    %v495 = vpack.c.bf16 %v420, %v417
    %v496 = vpack.c.bf16 %v428, %v425
    %v497 = vpack.c.bf16 %v436, %v433
    %v498 = vpack.c.bf16 %v444, %v441
    %v499 = vpack.c.bf16 %v452, %v449
    %v500 = vpack.c.bf16 %v460, %v457
    %v501 = vpack.c.bf16 %v468, %v465
    %v502 = vpack.c.bf16 %v476, %v473
    %s503 = smul.u32 4, 16
    %s504 = smul.u32 %s503, 1
    %s505 = sshll.u32 %s504, 4
    %506 = dma.done [#allocation3], %s505
    %v507 = vld [vmem:[#allocation2] sm:$0xff]
    %v508 = vld [vmem:[#allocation2 + $0x8] sm:$0xff]
    %v509 = vld [vmem:[#allocation2 + $0x10] sm:$0xff]
    %v510 = vld [vmem:[#allocation2 + $0x18] sm:$0xff]
    %v511 = vld [vmem:[#allocation2 + $0x20] sm:$0xff]
    %v512 = vld [vmem:[#allocation2 + $0x28] sm:$0xff]
    %v513 = vld [vmem:[#allocation2 + $0x30] sm:$0xff]
    %v514 = vld [vmem:[#allocation2 + $0x38] sm:$0xff]
    %515 = vmatprep.subr.bf16.mxu0 0
    %516 = vmatpush1.bf16.msra.mxu0 %v495
    %517 = vmatprep.subr.bf16.mxu0 0
    %518 = vmatpush1.bf16.msra.mxu0 %v496
    %519 = vmatprep.subr.bf16.mxu0 0
    %520 = vmatpush1.bf16.msra.mxu0 %v497
    %521 = vmatprep.subr.bf16.mxu0 0
    %522 = vmatpush1.bf16.msra.mxu0 %v498
    %523 = vmatprep.subr.bf16.mxu0 0
    %524 = vmatpush1.bf16.msra.mxu0 %v499
    %525 = vmatprep.subr.bf16.mxu0 0
    %526 = vmatpush1.bf16.msra.mxu0 %v500
    %527 = vmatprep.subr.bf16.mxu0 0
    %528 = vmatpush1.bf16.msra.mxu0 %v501
    %529 = vmatprep.subr.bf16.mxu0 0
    %530 = vmatpush1.bf16.msra.mxu0 %v502
    %531 = vmatprep.subr.bf16.mxu0 0
    %532 = vmatpush1.bf16.msra.mxu0 0
    %533 = vmatprep.subr.bf16.mxu0 0
    %534 = vmatpush1.bf16.msra.mxu0 0
    %535 = vmatprep.subr.bf16.mxu0 0
    %536 = vmatpush1.bf16.msra.mxu0 0
    %537 = vmatprep.subr.bf16.mxu0 0
    %538 = vmatpush1.bf16.msra.mxu0 0
    %539 = vmatprep.subr.bf16.mxu0 0
    %540 = vmatpush1.bf16.msra.mxu0 0
    %541 = vmatprep.subr.bf16.mxu0 0
    %542 = vmatpush1.bf16.msra.mxu0 0
    %543 = vmatprep.subr.bf16.mxu0 0
    %544 = vmatpush1.bf16.msra.mxu0 0
    %545 = vmatprep.subr.bf16.mxu0 0
    %546 = vmatpush1.bf16.msra.mxu0 0
    %547 = vmatprep.mubr.bf16.mxu0 0
    %548 = vmatmul.mubr.bf16.gmra.mrb[0].mxu0 %v507
    %v549 = vpop.f32.mrb[0].mxu0
    %v550 = vadd.f32 %v479, %v549
    %v551 = vpop.f32.mrb[0].mxu0
    %v552 = vpop.f32.mrb[0].mxu0
    %v553 = vadd.f32 %v480, %v552
    %v554 = vpop.f32.mrb[0].mxu0
    %555 = vmatprep.mubr.bf16.mxu0 0
    %556 = vmatmul.mubr.bf16.gmra.mrb[0].mxu0 %v508
    %v557 = vpop.f32.mrb[0].mxu0
    %v558 = vadd.f32 %v481, %v557
    %v559 = vpop.f32.mrb[0].mxu0
    %v560 = vpop.f32.mrb[0].mxu0
    %v561 = vadd.f32 %v482, %v560
    %v562 = vpop.f32.mrb[0].mxu0
    %563 = vmatprep.mubr.bf16.mxu0 0
    %564 = vmatmul.mubr.bf16.gmra.mrb[0].mxu0 %v509
    %v565 = vpop.f32.mrb[0].mxu0
    %v566 = vadd.f32 %v483, %v565
    %v567 = vpop.f32.mrb[0].mxu0
    %v568 = vpop.f32.mrb[0].mxu0
    %v569 = vadd.f32 %v484, %v568
    %v570 = vpop.f32.mrb[0].mxu0
    %571 = vmatprep.mubr.bf16.mxu0 0
    %572 = vmatmul.mubr.bf16.gmra.mrb[0].mxu0 %v510
    %v573 = vpop.f32.mrb[0].mxu0
    %v574 = vadd.f32 %v485, %v573
    %v575 = vpop.f32.mrb[0].mxu0
    %v576 = vpop.f32.mrb[0].mxu0
    %v577 = vadd.f32 %v486, %v576
    %v578 = vpop.f32.mrb[0].mxu0
    %579 = vmatprep.mubr.bf16.mxu0 0
    %580 = vmatmul.mubr.bf16.gmra.mrb[0].mxu0 %v511
    %v581 = vpop.f32.mrb[0].mxu0
    %v582 = vadd.f32 %v487, %v581
    %v583 = vpop.f32.mrb[0].mxu0
    %v584 = vpop.f32.mrb[0].mxu0
    %v585 = vadd.f32 %v488, %v584
    %v586 = vpop.f32.mrb[0].mxu0
    %587 = vmatprep.mubr.bf16.mxu0 0
    %588 = vmatmul.mubr.bf16.gmra.mrb[0].mxu0 %v512
    %v589 = vpop.f32.mrb[0].mxu0
    %v590 = vadd.f32 %v489, %v589
    %v591 = vpop.f32.mrb[0].mxu0
    %v592 = vpop.f32.mrb[0].mxu0
    %v593 = vadd.f32 %v490, %v592
    %v594 = vpop.f32.mrb[0].mxu0
    %595 = vmatprep.mubr.bf16.mxu0 0
    %596 = vmatmul.mubr.bf16.gmra.mrb[0].mxu0 %v513
    %v597 = vpop.f32.mrb[0].mxu0
    %v598 = vadd.f32 %v491, %v597
    %v599 = vpop.f32.mrb[0].mxu0
    %v600 = vpop.f32.mrb[0].mxu0
    %v601 = vadd.f32 %v492, %v600
    %v602 = vpop.f32.mrb[0].mxu0
    %603 = vmatprep.mubr.bf16.mxu0 0
    %604 = vmatmul.mubr.bf16.gmra.mrb[0].mxu0 %v514
    %v605 = vpop.f32.mrb[0].mxu0
    %v606 = vadd.f32 %v493, %v605
    %v607 = vpop.f32.mrb[0].mxu0
    %v608 = vpop.f32.mrb[0].mxu0
    %v609 = vadd.f32 %v494, %v608
    %v610 = vpop.f32.mrb[0].mxu0
    %611 = vdwg.mxu0
    %612 = vst [vmem:[#allocation10] sm:$0xff] %v550
    %613 = vst [vmem:[#allocation10 + $0x8] sm:$0xff] %v553
    %614 = vst [vmem:[#allocation10 + $0x10] sm:$0xff] %v558
    %615 = vst [vmem:[#allocation10 + $0x18] sm:$0xff] %v561
    %616 = vst [vmem:[#allocation10 + $0x20] sm:$0xff] %v566
    %617 = vst [vmem:[#allocation10 + $0x28] sm:$0xff] %v569
    %618 = vst [vmem:[#allocation10 + $0x30] sm:$0xff] %v574
    %619 = vst [vmem:[#allocation10 + $0x38] sm:$0xff] %v577
    %620 = vst [vmem:[#allocation10 + $0x40] sm:$0xff] %v582
    %621 = vst [vmem:[#allocation10 + $0x48] sm:$0xff] %v585
    %622 = vst [vmem:[#allocation10 + $0x50] sm:$0xff] %v590
    %623 = vst [vmem:[#allocation10 + $0x58] sm:$0xff] %v593
    %624 = vst [vmem:[#allocation10 + $0x60] sm:$0xff] %v598
    %625 = vst [vmem:[#allocation10 + $0x68] sm:$0xff] %v601
    %626 = vst [vmem:[#allocation10 + $0x70] sm:$0xff] %v606
    %627 = vst [vmem:[#allocation10 + $0x78] sm:$0xff] %v609
    %v628 = vld [vmem:[#allocation10] sm:$0xff]
    %v629 = vld [vmem:[#allocation10 + $0x8] sm:$0xff]
    %v630 = vld [vmem:[#allocation10 + $0x10] sm:$0xff]
    %v631 = vld [vmem:[#allocation10 + $0x18] sm:$0xff]
    %v632 = vld [vmem:[#allocation10 + $0x20] sm:$0xff]
    %v633 = vld [vmem:[#allocation10 + $0x28] sm:$0xff]
    %v634 = vld [vmem:[#allocation10 + $0x30] sm:$0xff]
    %v635 = vld [vmem:[#allocation10 + $0x38] sm:$0xff]
    %v636 = vld [vmem:[#allocation10 + $0x40] sm:$0xff]
    %v637 = vld [vmem:[#allocation10 + $0x48] sm:$0xff]
    %v638 = vld [vmem:[#allocation10 + $0x50] sm:$0xff]
    %v639 = vld [vmem:[#allocation10 + $0x58] sm:$0xff]
    %v640 = vld [vmem:[#allocation10 + $0x60] sm:$0xff]
    %v641 = vld [vmem:[#allocation10 + $0x68] sm:$0xff]
    %v642 = vld [vmem:[#allocation10 + $0x70] sm:$0xff]
    %v643 = vld [vmem:[#allocation10 + $0x78] sm:$0xff]
    %v644 = vld [vmem:[#allocation2] sm:$0xff]
    %v645 = vld [vmem:[#allocation2 + $0x8] sm:$0xff]
    %v646 = vld [vmem:[#allocation2 + $0x10] sm:$0xff]
    %v647 = vld [vmem:[#allocation2 + $0x18] sm:$0xff]
    %v648 = vld [vmem:[#allocation2 + $0x20] sm:$0xff]
    %v649 = vld [vmem:[#allocation2 + $0x28] sm:$0xff]
    %v650 = vld [vmem:[#allocation2 + $0x30] sm:$0xff]
    %v651 = vld [vmem:[#allocation2 + $0x38] sm:$0xff]
    %v652 = vpack.c.bf16 %v629, %v628
    %v653 = vpack.c.bf16 %v631, %v630
    %v654 = vpack.c.bf16 %v633, %v632
    %v655 = vpack.c.bf16 %v635, %v634
    %v656 = vpack.c.bf16 %v637, %v636
    %v657 = vpack.c.bf16 %v639, %v638
    %v658 = vpack.c.bf16 %v641, %v640
    %v659 = vpack.c.bf16 %v643, %v642
    %660 = vmatprep.subr.bf16.mxu0 0
    %661 = vmatpush1.bf16.msra.mxu0 %v652
    %662 = vmatprep.subr.bf16.mxu0 0
    %663 = vmatpush1.bf16.msra.mxu0 %v653
    %664 = vmatprep.subr.bf16.mxu0 0
    %665 = vmatpush1.bf16.msra.mxu0 %v654
    %666 = vmatprep.subr.bf16.mxu0 0
    %667 = vmatpush1.bf16.msra.mxu0 %v655
    %668 = vmatprep.subr.bf16.mxu0 0
    %669 = vmatpush1.bf16.msra.mxu0 %v656
    %670 = vmatprep.subr.bf16.mxu0 0
    %671 = vmatpush1.bf16.msra.mxu0 %v657
    %672 = vmatprep.subr.bf16.mxu0 0
    %673 = vmatpush1.bf16.msra.mxu0 %v658
    %674 = vmatprep.subr.bf16.mxu0 0
    %675 = vmatpush1.bf16.msra.mxu0 %v659
    %676 = vmatprep.subr.bf16.mxu0 0
    %677 = vmatpush1.bf16.msra.mxu0 0
    %678 = vmatprep.subr.bf16.mxu0 0
    %679 = vmatpush1.bf16.msra.mxu0 0
    %680 = vmatprep.subr.bf16.mxu0 0
    %681 = vmatpush1.bf16.msra.mxu0 0
    %682 = vmatprep.subr.bf16.mxu0 0
    %683 = vmatpush1.bf16.msra.mxu0 0
    %684 = vmatprep.subr.bf16.mxu0 0
    %685 = vmatpush1.bf16.msra.mxu0 0
    %686 = vmatprep.subr.bf16.mxu0 0
    %687 = vmatpush1.bf16.msra.mxu0 0
    %688 = vmatprep.subr.bf16.mxu0 0
    %689 = vmatpush1.bf16.msra.mxu0 0
    %690 = vmatprep.subr.bf16.mxu0 0
    %691 = vmatpush1.bf16.msra.mxu0 0
    %692 = vmatprep.mubr.bf16.mxu0 0
    %693 = vmatmul.mubr.bf16.gmra.mrb[0].mxu0 %v644
    %v694 = vpop.f32.mrb[0].mxu0
    %v695 = vadd.f32 %v479, %v694
    %v696 = vpop.f32.mrb[0].mxu0
    %v697 = vpop.f32.mrb[0].mxu0
    %v698 = vadd.f32 %v480, %v697
    %v699 = vpop.f32.mrb[0].mxu0
    %700 = vmatprep.mubr.bf16.mxu0 0
    %701 = vmatmul.mubr.bf16.gmra.mrb[0].mxu0 %v645
    %v702 = vpop.f32.mrb[0].mxu0
    %v703 = vadd.f32 %v481, %v702
    %v704 = vpop.f32.mrb[0].mxu0
    %v705 = vpop.f32.mrb[0].mxu0
    %v706 = vadd.f32 %v482, %v705
    %v707 = vpop.f32.mrb[0].mxu0
    %708 = vmatprep.mubr.bf16.mxu0 0
    %709 = vmatmul.mubr.bf16.gmra.mrb[0].mxu0 %v646
    %v710 = vpop.f32.mrb[0].mxu0
    %v711 = vadd.f32 %v483, %v710
    %v712 = vpop.f32.mrb[0].mxu0
    %v713 = vpop.f32.mrb[0].mxu0
    %v714 = vadd.f32 %v484, %v713
    %v715 = vpop.f32.mrb[0].mxu0
    %716 = vmatprep.mubr.bf16.mxu0 0
    %717 = vmatmul.mubr.bf16.gmra.mrb[0].mxu0 %v647
    %v718 = vpop.f32.mrb[0].mxu0
    %v719 = vadd.f32 %v485, %v718
    %v720 = vpop.f32.mrb[0].mxu0
    %v721 = vpop.f32.mrb[0].mxu0
    %v722 = vadd.f32 %v486, %v721
    %v723 = vpop.f32.mrb[0].mxu0
    %724 = vmatprep.mubr.bf16.mxu0 0
    %725 = vmatmul.mubr.bf16.gmra.mrb[0].mxu0 %v648
    %v726 = vpop.f32.mrb[0].mxu0
    %v727 = vadd.f32 %v487, %v726
    %v728 = vpop.f32.mrb[0].mxu0
    %v729 = vpop.f32.mrb[0].mxu0
    %v730 = vadd.f32 %v488, %v729
    %v731 = vpop.f32.mrb[0].mxu0
    %732 = vmatprep.mubr.bf16.mxu0 0
    %733 = vmatmul.mubr.bf16.gmra.mrb[0].mxu0 %v649
    %v734 = vpop.f32.mrb[0].mxu0
    %v735 = vadd.f32 %v489, %v734
    %v736 = vpop.f32.mrb[0].mxu0
    %v737 = vpop.f32.mrb[0].mxu0
    %v738 = vadd.f32 %v490, %v737
    %v739 = vpop.f32.mrb[0].mxu0
    %740 = vmatprep.mubr.bf16.mxu0 0
    %741 = vmatmul.mubr.bf16.gmra.mrb[0].mxu0 %v650
    %v742 = vpop.f32.mrb[0].mxu0
    %v743 = vadd.f32 %v491, %v742
    %v744 = vpop.f32.mrb[0].mxu0
    %v745 = vpop.f32.mrb[0].mxu0
    %v746 = vadd.f32 %v492, %v745
    %v747 = vpop.f32.mrb[0].mxu0
    %748 = vmatprep.mubr.bf16.mxu0 0
    %749 = vmatmul.mubr.bf16.gmra.mrb[0].mxu0 %v651
    %v750 = vpop.f32.mrb[0].mxu0
    %v751 = vadd.f32 %v493, %v750
    %v752 = vpop.f32.mrb[0].mxu0
    %v753 = vpop.f32.mrb[0].mxu0
    %v754 = vadd.f32 %v494, %v753
    %v755 = vpop.f32.mrb[0].mxu0
    %756 = vdwg.mxu0
    %v757 = vpack.c.bf16 %v698, %v695
    %v758 = vpack.c.bf16 %v706, %v703
    %v759 = vpack.c.bf16 %v714, %v711
    %v760 = vpack.c.bf16 %v722, %v719
    %v761 = vpack.c.bf16 %v730, %v727
    %v762 = vpack.c.bf16 %v738, %v735
    %v763 = vpack.c.bf16 %v746, %v743
    %v764 = vpack.c.bf16 %v754, %v751
    %765 = vmatprep.subr.bf16.mxu0 0
    %766 = vmatpush1.bf16.msra.mxu0 %v757
    %767 = vmatprep.subr.bf16.mxu0 0
    %768 = vmatpush1.bf16.msra.mxu0 %v758
    %769 = vmatprep.subr.bf16.mxu0 0
    %770 = vmatpush1.bf16.msra.mxu0 %v759
    %771 = vmatprep.subr.bf16.mxu0 0
    %772 = vmatpush1.bf16.msra.mxu0 %v760
    %773 = vmatprep.subr.bf16.mxu0 0
    %774 = vmatpush1.bf16.msra.mxu0 %v761
    %775 = vmatprep.subr.bf16.mxu0 0
    %776 = vmatpush1.bf16.msra.mxu0 %v762
    %777 = vmatprep.subr.bf16.mxu0 0
    %778 = vmatpush1.bf16.msra.mxu0 %v763
    %779 = vmatprep.subr.bf16.mxu0 0
    %780 = vmatpush1.bf16.msra.mxu0 %v764
    %781 = vmatprep.subr.bf16.mxu0 0
    %782 = vmatpush1.bf16.msra.mxu0 0
    %783 = vmatprep.subr.bf16.mxu0 0
    %784 = vmatpush1.bf16.msra.mxu0 0
    %785 = vmatprep.subr.bf16.mxu0 0
    %786 = vmatpush1.bf16.msra.mxu0 0
    %787 = vmatprep.subr.bf16.mxu0 0
    %788 = vmatpush1.bf16.msra.mxu0 0
    %789 = vmatprep.subr.bf16.mxu0 0
    %790 = vmatpush1.bf16.msra.mxu0 0
    %791 = vmatprep.subr.bf16.mxu0 0
    %792 = vmatpush1.bf16.msra.mxu0 0
    %793 = vmatprep.subr.bf16.mxu0 0
    %794 = vmatpush1.bf16.msra.mxu0 0
    %795 = vmatprep.subr.bf16.mxu0 0
    %796 = vmatpush1.bf16.msra.mxu0 0
    %797 = vmatprep.mubr.bf16.mxu0 0
    %798 = vmatmul.mubr.bf16.gmra.mrb[0].mxu0 %v644
    %v799 = vpop.f32.mrb[0].mxu0
    %v800 = vadd.f32 %v479, %v799
    %v801 = vpop.f32.mrb[0].mxu0
    %v802 = vpop.f32.mrb[0].mxu0
    %v803 = vadd.f32 %v480, %v802
    %v804 = vpop.f32.mrb[0].mxu0
    %805 = vmatprep.mubr.bf16.mxu0 0
    %806 = vmatmul.mubr.bf16.gmra.mrb[0].mxu0 %v645
    %v807 = vpop.f32.mrb[0].mxu0
    %v808 = vadd.f32 %v481, %v807
    %v809 = vpop.f32.mrb[0].mxu0
    %v810 = vpop.f32.mrb[0].mxu0
    %v811 = vadd.f32 %v482, %v810
    %v812 = vpop.f32.mrb[0].mxu0
    %813 = vmatprep.mubr.bf16.mxu0 0
    %814 = vmatmul.mubr.bf16.gmra.mrb[0].mxu0 %v646
    %v815 = vpop.f32.mrb[0].mxu0
    %v816 = vadd.f32 %v483, %v815
    %v817 = vpop.f32.mrb[0].mxu0
    %v818 = vpop.f32.mrb[0].mxu0
    %v819 = vadd.f32 %v484, %v818
    %v820 = vpop.f32.mrb[0].mxu0
    %821 = vmatprep.mubr.bf16.mxu0 0
    %822 = vmatmul.mubr.bf16.gmra.mrb[0].mxu0 %v647
    %v823 = vpop.f32.mrb[0].mxu0
    %v824 = vadd.f32 %v485, %v823
    %v825 = vpop.f32.mrb[0].mxu0
    %v826 = vpop.f32.mrb[0].mxu0
    %v827 = vadd.f32 %v486, %v826
    %v828 = vpop.f32.mrb[0].mxu0
    %829 = vmatprep.mubr.bf16.mxu0 0
    %830 = vmatmul.mubr.bf16.gmra.mrb[0].mxu0 %v648
    %v831 = vpop.f32.mrb[0].mxu0
    %v832 = vadd.f32 %v487, %v831
    %v833 = vpop.f32.mrb[0].mxu0
    %v834 = vpop.f32.mrb[0].mxu0
    %v835 = vadd.f32 %v488, %v834
    %v836 = vpop.f32.mrb[0].mxu0
    %837 = vmatprep.mubr.bf16.mxu0 0
    %838 = vmatmul.mubr.bf16.gmra.mrb[0].mxu0 %v649
    %v839 = vpop.f32.mrb[0].mxu0
    %v840 = vadd.f32 %v489, %v839
    %v841 = vpop.f32.mrb[0].mxu0
    %v842 = vpop.f32.mrb[0].mxu0
    %v843 = vadd.f32 %v490, %v842
    %v844 = vpop.f32.mrb[0].mxu0
    %845 = vmatprep.mubr.bf16.mxu0 0
    %846 = vmatmul.mubr.bf16.gmra.mrb[0].mxu0 %v650
    %v847 = vpop.f32.mrb[0].mxu0
    %v848 = vadd.f32 %v491, %v847
    %v849 = vpop.f32.mrb[0].mxu0
    %v850 = vpop.f32.mrb[0].mxu0
    %v851 = vadd.f32 %v492, %v850
    %v852 = vpop.f32.mrb[0].mxu0
    %853 = vmatprep.mubr.bf16.mxu0 0
    %854 = vmatmul.mubr.bf16.gmra.mrb[0].mxu0 %v651
    %v855 = vpop.f32.mrb[0].mxu0
    %v856 = vadd.f32 %v493, %v855
    %v857 = vpop.f32.mrb[0].mxu0
    %v858 = vpop.f32.mrb[0].mxu0
    %v859 = vadd.f32 %v494, %v858
    %v860 = vpop.f32.mrb[0].mxu0
    %861 = vdwg.mxu0
    %v862 = vpack.c.bf16 %v803, %v800
    %v863 = vpack.c.bf16 %v811, %v808
    %v864 = vpack.c.bf16 %v819, %v816
    %v865 = vpack.c.bf16 %v827, %v824
    %v866 = vpack.c.bf16 %v835, %v832
    %v867 = vpack.c.bf16 %v843, %v840
    %v868 = vpack.c.bf16 %v851, %v848
    %v869 = vpack.c.bf16 %v859, %v856
    %870 = vmatprep.subr.bf16.mxu0 0
    %871 = vmatpush1.bf16.msra.mxu0 %v862
    %872 = vmatprep.subr.bf16.mxu0 0
    %873 = vmatpush1.bf16.msra.mxu0 %v863
    %874 = vmatprep.subr.bf16.mxu0 0
    %875 = vmatpush1.bf16.msra.mxu0 %v864
    %876 = vmatprep.subr.bf16.mxu0 0
    %877 = vmatpush1.bf16.msra.mxu0 %v865
    %878 = vmatprep.subr.bf16.mxu0 0
    %879 = vmatpush1.bf16.msra.mxu0 %v866
    %880 = vmatprep.subr.bf16.mxu0 0
    %881 = vmatpush1.bf16.msra.mxu0 %v867
    %882 = vmatprep.subr.bf16.mxu0 0
    %883 = vmatpush1.bf16.msra.mxu0 %v868
    %884 = vmatprep.subr.bf16.mxu0 0
    %885 = vmatpush1.bf16.msra.mxu0 %v869
    %886 = vmatprep.subr.bf16.mxu0 0
    %887 = vmatpush1.bf16.msra.mxu0 0
    %888 = vmatprep.subr.bf16.mxu0 0
    %889 = vmatpush1.bf16.msra.mxu0 0
    %890 = vmatprep.subr.bf16.mxu0 0
    %891 = vmatpush1.bf16.msra.mxu0 0
    %892 = vmatprep.subr.bf16.mxu0 0
    %893 = vmatpush1.bf16.msra.mxu0 0
    %894 = vmatprep.subr.bf16.mxu0 0
    %895 = vmatpush1.bf16.msra.mxu0 0
    %896 = vmatprep.subr.bf16.mxu0 0
    %897 = vmatpush1.bf16.msra.mxu0 0
    %898 = vmatprep.subr.bf16.mxu0 0
    %899 = vmatpush1.bf16.msra.mxu0 0
    %900 = vmatprep.subr.bf16.mxu0 0
    %901 = vmatpush1.bf16.msra.mxu0 0
    %902 = vmatprep.mubr.bf16.mxu0 0
    %903 = vmatmul.mubr.bf16.gmra.mrb[0].mxu0 %v644
    %v904 = vpop.f32.mrb[0].mxu0
    %v905 = vadd.f32 %v479, %v904
    %v906 = vpop.f32.mrb[0].mxu0
    %v907 = vpop.f32.mrb[0].mxu0
    %v908 = vadd.f32 %v480, %v907
    %v909 = vpop.f32.mrb[0].mxu0
    %910 = vmatprep.mubr.bf16.mxu0 0
    %911 = vmatmul.mubr.bf16.gmra.mrb[0].mxu0 %v645
    %v912 = vpop.f32.mrb[0].mxu0
    %v913 = vadd.f32 %v481, %v912
    %v914 = vpop.f32.mrb[0].mxu0
    %v915 = vpop.f32.mrb[0].mxu0
    %v916 = vadd.f32 %v482, %v915
    %v917 = vpop.f32.mrb[0].mxu0
    %918 = vmatprep.mubr.bf16.mxu0 0
    %919 = vmatmul.mubr.bf16.gmra.mrb[0].mxu0 %v646
    %v920 = vpop.f32.mrb[0].mxu0
    %v921 = vadd.f32 %v483, %v920
    %v922 = vpop.f32.mrb[0].mxu0
    %v923 = vpop.f32.mrb[0].mxu0
    %v924 = vadd.f32 %v484, %v923
    %v925 = vpop.f32.mrb[0].mxu0
    %926 = vmatprep.mubr.bf16.mxu0 0
    %927 = vmatmul.mubr.bf16.gmra.mrb[0].mxu0 %v647
    %v928 = vpop.f32.mrb[0].mxu0
    %v929 = vadd.f32 %v485, %v928
    %v930 = vpop.f32.mrb[0].mxu0
    %v931 = vpop.f32.mrb[0].mxu0
    %v932 = vadd.f32 %v486, %v931
    %v933 = vpop.f32.mrb[0].mxu0
    %934 = vmatprep.mubr.bf16.mxu0 0
    %935 = vmatmul.mubr.bf16.gmra.mrb[0].mxu0 %v648
    %v936 = vpop.f32.mrb[0].mxu0
    %v937 = vadd.f32 %v487, %v936
    %v938 = vpop.f32.mrb[0].mxu0
    %v939 = vpop.f32.mrb[0].mxu0
    %v940 = vadd.f32 %v488, %v939
    %v941 = vpop.f32.mrb[0].mxu0
    %942 = vmatprep.mubr.bf16.mxu0 0
    %943 = vmatmul.mubr.bf16.gmra.mrb[0].mxu0 %v649
    %v944 = vpop.f32.mrb[0].mxu0
    %v945 = vadd.f32 %v489, %v944
    %v946 = vpop.f32.mrb[0].mxu0
    %v947 = vpop.f32.mrb[0].mxu0
    %v948 = vadd.f32 %v490, %v947
    %v949 = vpop.f32.mrb[0].mxu0
    %950 = vmatprep.mubr.bf16.mxu0 0
    %951 = vmatmul.mubr.bf16.gmra.mrb[0].mxu0 %v650
    %v952 = vpop.f32.mrb[0].mxu0
    %v953 = vadd.f32 %v491, %v952
    %v954 = vpop.f32.mrb[0].mxu0
    %v955 = vpop.f32.mrb[0].mxu0
    %v956 = vadd.f32 %v492, %v955
    %v957 = vpop.f32.mrb[0].mxu0
    %958 = vmatprep.mubr.bf16.mxu0 0
    %959 = vmatmul.mubr.bf16.gmra.mrb[0].mxu0 %v651
    %v960 = vpop.f32.mrb[0].mxu0
    %v961 = vadd.f32 %v493, %v960
    %v962 = vpop.f32.mrb[0].mxu0
    %v963 = vpop.f32.mrb[0].mxu0
    %v964 = vadd.f32 %v494, %v963
    %v965 = vpop.f32.mrb[0].mxu0
    %966 = vdwg.mxu0
    %967 = vst [vmem:[#allocation10] sm:$0xff] %v905
    %968 = vst [vmem:[#allocation10 + $0x8] sm:$0xff] %v908
    %969 = vst [vmem:[#allocation10 + $0x10] sm:$0xff] %v913
    %970 = vst [vmem:[#allocation10 + $0x18] sm:$0xff] %v916
    %971 = vst [vmem:[#allocation10 + $0x20] sm:$0xff] %v921
    %972 = vst [vmem:[#allocation10 + $0x28] sm:$0xff] %v924
    %973 = vst [vmem:[#allocation10 + $0x30] sm:$0xff] %v929
    %974 = vst [vmem:[#allocation10 + $0x38] sm:$0xff] %v932
    %975 = vst [vmem:[#allocation10 + $0x40] sm:$0xff] %v937
    %976 = vst [vmem:[#allocation10 + $0x48] sm:$0xff] %v940
    %977 = vst [vmem:[#allocation10 + $0x50] sm:$0xff] %v945
    %978 = vst [vmem:[#allocation10 + $0x58] sm:$0xff] %v948
    %979 = vst [vmem:[#allocation10 + $0x60] sm:$0xff] %v953
    %980 = vst [vmem:[#allocation10 + $0x68] sm:$0xff] %v956
    %981 = vst [vmem:[#allocation10 + $0x70] sm:$0xff] %v961
    %982 = vst [vmem:[#allocation10 + $0x78] sm:$0xff] %v964
    // Predicated region
    $region30: #{tpu_custom_call.1} parent=1 // pred_check
      _
    $region31: #{tpu_custom_call.1} parent=1 // pred_check_branch
      %984 = sbr.rel (0) target = $region33
    $region32: #{tpu_custom_call.1} parent=1 // pred_region
      %s986 = ssub.s32 2048, 2048
      %987 = vsyncadd [#allocation6], %s986
      %s988 = sshll.u32 [#allocation10], 4
      %s989 = int_to_ptr.vmem [resolvable:$true] %s988
      %994 = dma.vmem_to_hbm [thread:$0]  %s989, 2048, %s4, [#allocation6], 128, 128, 8
    $region33: #{tpu_custom_call.1} parent=1 // pred_fallthru
      _
    // Predicated region
    $region34: #{tpu_custom_call.1} parent=1 // pred_check
      _
    $region35: #{tpu_custom_call.1} parent=1 // pred_check_branch
      %996 = sbr.rel (0) target = $region37
    $region36: #{tpu_custom_call.1} parent=1 // pred_region
      %997 = dma.done [#allocation6], 2048
    $region37: #{tpu_custom_call.1} parent=1 // pred_fallthru
      _
    %998 = vsyncpa [#allocation5], 1
    %999 = vsyncpa [#allocation8], 1
    %1000 = vsyncpa [#allocation6], 1
  %1001 = vsyncmov [#allocation3]
  %s1002 = vpop.sfrf %1001
  %p1003 = scmp.eq.s32.totalorder %s1002, 0
  %p1004 = pneg %p1003
  %1006 = shalt.err (%p1004)
  %s1007 = scalar_lea.sflag [#allocation3], 1
  %1008 = vsyncmov %s1007
  %s1009 = vpop.sfrf %1008
  %p1010 = scmp.eq.s32.totalorder %s1009, 0
  %p1011 = pneg %p1010
  %1013 = shalt.err (%p1011)

</llo_original>
